<compile_context>
chip_gen: v5e
topology: v5e:2x2
jax: 0.10.0
libtpu: 0.0.40
codegen_flags: <defaults>
</compile_context>

<pallas_src>
import functools

import jax
import jax.numpy as jnp
from jax.experimental import pallas as pl
from jax.experimental.pallas import tpu as pltpu

# Hidden sizes from the PyTorch module.
H1, H2 = 24, 48
# All feature axes padded to one full lane tile (lane-dense loads/stores/matmuls).
HPAD = 128

# Packed parameter buffer layout: (P_ROWS, 128) f32, 8-row (sublane) aligned
# regions so every in-kernel slice is a cheap static aligned view.
W1_ROW0 = 0                      # 8 rows reserved; rows [0, input_size) = W1 (in, 24)
B1_ROW = 8                       # 8 rows reserved; row 8 = b1
W2_ROW0 = 16                     # 128 rows; rows [16, 16+24) = W2 (24, 48)
B2_ROW = W2_ROW0 + HPAD          # 144; row 144 = b2
W3_ROW0 = B2_ROW + 8             # 152; rows [152, 152+48) = W3 (48, A)
B3_ROW = W3_ROW0 + HPAD          # 280; row 280 = b3
P_ROWS = B3_ROW + 8              # 288 rows * 128 lanes * 4 B ~= 144 KiB


def _round_up(x, m):
    return ((x + m - 1) // m) * m


def dqn_kernel(x_ref, p_ref, o_ref, *, input_size):
    x = x_ref[...]                                   # (TB, input_size) f32

    # ---- fc1: K=4 contraction stays off the MXU (unrolled VPU mul-add). ----
    w1_blk = p_ref[W1_ROW0:W1_ROW0 + 8, :]           # (8, HPAD); rows >= input_size are 0
    pre1 = p_ref[B1_ROW:B1_ROW + 1, :]               # (1, HPAD) bias, broadcasts over batch
    for k in range(input_size):                      # static unroll
        pre1 = pre1 + x[:, k:k + 1] * w1_blk[k:k + 1, :]
    h1 = jnp.tanh(pre1)                              # (TB, HPAD); pad lanes stay exactly 0

    # ---- fc2: (TB,128) @ (128,128) on the MXU (zero-padded rows/cols). ----
    w2 = p_ref[W2_ROW0:W2_ROW0 + HPAD, :]
    b2 = p_ref[B2_ROW:B2_ROW + 1, :]
    h2 = jnp.tanh(jnp.dot(h1, w2, preferred_element_type=jnp.float32) + b2)

    # ---- fc3: (TB,128) @ (128,128); output is lane-dense, pad lanes are 0. ----
    w3 = p_ref[W3_ROW0:W3_ROW0 + HPAD, :]
    b3 = p_ref[B3_ROW:B3_ROW + 1, :]
    q = jnp.dot(h2, w3, preferred_element_type=jnp.float32) + b3

    o_ref[...] = q.astype(o_ref.dtype)               # unmasked full-width store


def pack_params(params, input_size, action_size):
    """Fold all 6 weight/bias arrays into one zero-padded (P_ROWS, 128) buffer."""
    buf = jnp.zeros((P_ROWS, HPAD), jnp.float32)
    buf = buf.at[W1_ROW0:W1_ROW0 + input_size, 0:H1].set(params["w1"])
    buf = buf.at[B1_ROW, 0:H1].set(params["b1"].reshape(H1))
    buf = buf.at[W2_ROW0:W2_ROW0 + H1, 0:H2].set(params["w2"])
    buf = buf.at[B2_ROW, 0:H2].set(params["b2"].reshape(H2))
    buf = buf.at[W3_ROW0:W3_ROW0 + H2, 0:action_size].set(params["w3"])
    buf = buf.at[B3_ROW, 0:action_size].set(params["b3"].reshape(action_size))
    return buf


def dqn_forward(x, packed_params, *, input_size, action_size, block_batch=512):
    """x: (B, input_size) f32. packed_params: (P_ROWS, HPAD) f32 from pack_params."""
    B = x.shape[0]
    # Batch tile: multiple of 8 sublanes, capped (keeps double-buffered x/out
    # tiles comfortably inside v7x's smaller scoped VMEM at large batches).
    TB = min(block_batch, _round_up(B, 8))
    Bp = _round_up(B, TB)
    if Bp != B:
        x = jnp.pad(x, ((0, Bp - B), (0, 0)))

    grid = (Bp // TB,)
    kernel = functools.partial(dqn_kernel, input_size=input_size)

    flops = 2 * B * (input_size * H1 + H1 * H2 + H2 * action_size)
    transcendentals = B * (H1 + H2)
    bytes_accessed = int(Bp * input_size * 4 + packed_params.size * 4 + Bp * HPAD * 4)

    out = pl.pallas_call(
        kernel,
        out_shape=jax.ShapeDtypeStruct((Bp, HPAD), jnp.float32),
        grid=grid,
        in_specs=[
            # Activations: tiled over batch.
            pl.BlockSpec((TB, input_size), lambda i: (i, 0)),
            # Packed params: constant index_map -> VMEM-resident across steps.
            pl.BlockSpec((P_ROWS, HPAD), lambda i: (0, 0)),
        ],
        out_specs=pl.BlockSpec((TB, HPAD), lambda i: (i, 0)),
        compiler_params=pltpu.CompilerParams(
            dimension_semantics=("parallel",),       # shards batch over v7x's 2 TCs
        ),
        cost_estimate=pl.CostEstimate(
            flops=int(flops),
            transcendentals=int(transcendentals),
            bytes_accessed=bytes_accessed,
        ),
    )(x, packed_params)

    return out[:B, :action_size]


def init_dqn_params(key, input_size, action_size):
    """PyTorch-Linear-style init: U(-1/sqrt(fan_in), 1/sqrt(fan_in)).
    Weights stored transposed as (in_features, out_features)."""
    dims = [(input_size, H1), (H1, H2), (H2, action_size)]
    params = {}
    for idx, (fan_in, fan_out) in enumerate(dims, start=1):
        key, kw, kb = jax.random.split(key, 3)
        bound = 1.0 / jnp.sqrt(float(fan_in))
        params[f"w{idx}"] = jax.random.uniform(
            kw, (fan_in, fan_out), jnp.float32, minval=-bound, maxval=bound
        )
        params[f"b{idx}"] = jax.random.uniform(
            kb, (1, fan_out), jnp.float32, minval=-bound, maxval=bound
        )
    return params


def reference_forward(x, params):
    """Plain-JAX reference of the same forward pass (sanity check)."""
    h1 = jnp.tanh(x @ params["w1"] + params["b1"])
    h2 = jnp.tanh(h1 @ params["w2"] + params["b2"])
    return h2 @ params["w3"] + params["b3"]


if __name__ == "__main__":
    # CartPole-like: observation size 4, 2 actions; small batch of 8 states.
    input_size, action_size, batch = 4, 2, 8

    key = jax.random.PRNGKey(0)
    key, kx = jax.random.split(key)
    x = jax.random.normal(kx, (batch, input_size), dtype=jnp.float32)

    params = init_dqn_params(key, input_size, action_size)
    packed = pack_params(params, input_size, action_size)

    q = dqn_forward(x, packed, input_size=input_size, action_size=action_size)
    q = jax.block_until_ready(q)

    q_ref = reference_forward(x, params)
    assert q.shape == (batch, action_size)
    assert jnp.allclose(q, q_ref, atol=1e-5, rtol=1e-5)

    print("KERNEL_OK")
</pallas_src>

<mosaic_0001>
module attributes {stable_mosaic.version = 11 : i64} {
  func.func @dqn_kernel(%arg0: i32, %arg1: memref<8x4xf32, #tpu.memory_space<vmem>>, %arg2: memref<288x128xf32, #tpu.memory_space<vmem>>, %arg3: memref<8x128xf32, #tpu.memory_space<vmem>>) attributes {dimension_semantics = [#tpu.dimension_semantics<parallel>], iteration_bounds = array<i64: 1>, scalar_prefetch = 0 : i64, scratch_operands = 0 : i64, tpu.core_type = #tpu.core_type<tc>, window_params = [{transform_indices = @transform_0, window_bounds = array<i64: 8, 4>}, {pipeline_mode = #tpu.pipeline_mode<synchronous>, transform_indices = @transform_1, window_bounds = array<i64: 288, 128>}, {transform_indices = @transform_2, window_bounds = array<i64: 8, 128>}]} {
    %c0 = arith.constant 0 : index
    %c0_0 = arith.constant 0 : index
    %0 = vector.load %arg1[%c0, %c0_0] : memref<8x4xf32, #tpu.memory_space<vmem>>, vector<8x4xf32>
    %c0_1 = arith.constant 0 : index
    %c0_2 = arith.constant 0 : index
    %1 = vector.load %arg2[%c0_1, %c0_2] : memref<288x128xf32, #tpu.memory_space<vmem>>, vector<8x128xf32>
    %c8 = arith.constant 8 : index
    %c0_3 = arith.constant 0 : index
    %2 = vector.load %arg2[%c8, %c0_3] : memref<288x128xf32, #tpu.memory_space<vmem>>, vector<1x128xf32>
    %3 = vector.extract_strided_slice %0 {offsets = [0, 0], sizes = [8, 1], strides = [1, 1]} : vector<8x4xf32> to vector<8x1xf32>
    %4 = vector.extract_strided_slice %1 {offsets = [0, 0], sizes = [1, 128], strides = [1, 1]} : vector<8x128xf32> to vector<1x128xf32>
    %5 = vector.broadcast %3 : vector<8x1xf32> to vector<8x128xf32>
    %6 = vector.broadcast %4 : vector<1x128xf32> to vector<8x128xf32>
    %7 = arith.mulf %5, %6 : vector<8x128xf32>
    %8 = vector.broadcast %2 : vector<1x128xf32> to vector<8x128xf32>
    %9 = arith.addf %8, %7 : vector<8x128xf32>
    %10 = vector.extract_strided_slice %0 {offsets = [0, 1], sizes = [8, 1], strides = [1, 1]} : vector<8x4xf32> to vector<8x1xf32>
    %11 = vector.extract_strided_slice %1 {offsets = [1, 0], sizes = [1, 128], strides = [1, 1]} : vector<8x128xf32> to vector<1x128xf32>
    %12 = vector.broadcast %10 : vector<8x1xf32> to vector<8x128xf32>
    %13 = vector.broadcast %11 : vector<1x128xf32> to vector<8x128xf32>
    %14 = arith.mulf %12, %13 : vector<8x128xf32>
    %15 = arith.addf %9, %14 : vector<8x128xf32>
    %16 = vector.extract_strided_slice %0 {offsets = [0, 2], sizes = [8, 1], strides = [1, 1]} : vector<8x4xf32> to vector<8x1xf32>
    %17 = vector.extract_strided_slice %1 {offsets = [2, 0], sizes = [1, 128], strides = [1, 1]} : vector<8x128xf32> to vector<1x128xf32>
    %18 = vector.broadcast %16 : vector<8x1xf32> to vector<8x128xf32>
    %19 = vector.broadcast %17 : vector<1x128xf32> to vector<8x128xf32>
    %20 = arith.mulf %18, %19 : vector<8x128xf32>
    %21 = arith.addf %15, %20 : vector<8x128xf32>
    %22 = vector.extract_strided_slice %0 {offsets = [0, 3], sizes = [8, 1], strides = [1, 1]} : vector<8x4xf32> to vector<8x1xf32>
    %23 = vector.extract_strided_slice %1 {offsets = [3, 0], sizes = [1, 128], strides = [1, 1]} : vector<8x128xf32> to vector<1x128xf32>
    %24 = vector.broadcast %22 : vector<8x1xf32> to vector<8x128xf32>
    %25 = vector.broadcast %23 : vector<1x128xf32> to vector<8x128xf32>
    %26 = arith.mulf %24, %25 : vector<8x128xf32>
    %27 = arith.addf %21, %26 : vector<8x128xf32>
    %28 = math.tanh %27 : vector<8x128xf32>
    %c16 = arith.constant 16 : index
    %c0_4 = arith.constant 0 : index
    %29 = vector.load %arg2[%c16, %c0_4] : memref<288x128xf32, #tpu.memory_space<vmem>>, vector<128x128xf32>
    %c144 = arith.constant 144 : index
    %c0_5 = arith.constant 0 : index
    %30 = vector.load %arg2[%c144, %c0_5] : memref<288x128xf32, #tpu.memory_space<vmem>>, vector<1x128xf32>
    %cst = arith.constant dense<0.000000e+00> : vector<8x128xf32>
    %31 = tpu.matmul %28, %29, %cst {dimension_numbers = #tpu.dot_dimension_numbers<[1], [0], [0], [1], [0, 0, 1, 1], [], []>} : vector<8x128xf32>, vector<128x128xf32>, vector<8x128xf32> -> vector<8x128xf32>
    %32 = vector.broadcast %30 : vector<1x128xf32> to vector<8x128xf32>
    %33 = arith.addf %31, %32 : vector<8x128xf32>
    %34 = math.tanh %33 : vector<8x128xf32>
    %c152 = arith.constant 152 : index
    %c0_6 = arith.constant 0 : index
    %35 = vector.load %arg2[%c152, %c0_6] : memref<288x128xf32, #tpu.memory_space<vmem>>, vector<128x128xf32>
    %c280 = arith.constant 280 : index
    %c0_7 = arith.constant 0 : index
    %36 = vector.load %arg2[%c280, %c0_7] : memref<288x128xf32, #tpu.memory_space<vmem>>, vector<1x128xf32>
    %cst_8 = arith.constant dense<0.000000e+00> : vector<8x128xf32>
    %37 = tpu.matmul %34, %35, %cst_8 {dimension_numbers = #tpu.dot_dimension_numbers<[1], [0], [0], [1], [0, 0, 1, 1], [], []>} : vector<8x128xf32>, vector<128x128xf32>, vector<8x128xf32> -> vector<8x128xf32>
    %38 = vector.broadcast %36 : vector<1x128xf32> to vector<8x128xf32>
    %39 = arith.addf %37, %38 : vector<8x128xf32>
    %c0_9 = arith.constant 0 : index
    %c0_10 = arith.constant 0 : index
    %40 = vector.load %arg3[%c0_9, %c0_10] : memref<8x128xf32, #tpu.memory_space<vmem>>, vector<8x128xf32>
    tpu.vector_store %arg3[%c0_9, %c0_10], %39 {strides = array<i32>} : memref<8x128xf32, #tpu.memory_space<vmem>>, vector<8x128xf32>,
    return
  }
  func.func @transform_0(%arg0: i32) -> (i32, i32) {
    %c0_i32 = arith.constant 0 : i32
    %c0_i32_0 = arith.constant 0 : i32
    return %arg0, %c0_i32 : i32, i32
  }
  func.func @transform_1(%arg0: i32) -> (i32, i32) {
    %c0_i32 = arith.constant 0 : i32
    %c0_i32_0 = arith.constant 0 : i32
    %c0_i32_1 = arith.constant 0 : i32
    return %c0_i32, %c0_i32_0 : i32, i32
  }
  func.func @transform_2(%arg0: i32) -> (i32, i32) {
    %c0_i32 = arith.constant 0 : i32
    %c0_i32_0 = arith.constant 0 : i32
    return %arg0, %c0_i32 : i32, i32
  }
}

</mosaic_0001>

<llo_original>
// kernel: tpu_custom_call.1
$region0: #{tpu_custom_call.1}
  #allocation0 [shape = 'u32[]', space=smem, size = 0x4, offset = 0x4, fixed_abs, tag = 'smem constant byte address 0x4 - core index']
  #allocation1 [shape = 'u32[72,128]{1,0:T(1,128)}', space=vmem, size = 0x9000, scoped, tag = 'internal scratch']
  %s0 = inlined_call_operand.vmem [shape: f32[8,4], index: 0, kind: input, shape index: {}]
  %s1 = inlined_call_operand.hbm [shape: f32[288,128], index: 1, kind: input, shape index: {}]
  %s2 = inlined_call_operand.hbm [shape: f32[8,128], index: 2, kind: output, shape index: {}]
  %s3 = sld [smem:[#allocation0]]
  $region22: #{tpu_custom_call.1} parent=0
    _
  %s5 = ssub.s32 1, %s3
  %s6 = scalar_select 0, %s5, %s3
  $region1: #{tpu_custom_call.1} parent=0
    #allocation2 [shape = 'u8[147456]{0}', space=vmem, size = 0x24000, scoped, tag = 'input window, operand 1, single buffered']
    #allocation3 [shape = 's32[1]{0}', space=sflag, size = 0x4, scoped, tag = 'scoped memory for tpu_custom_call.1']
    #allocation4 [shape = 's32[1]{0}', space=sflag, size = 0x4, scoped, tag = 'scoped memory for tpu_custom_call.1']
    #allocation5 [shape = 'u8[4096]{0}', space=vmem, size = 0x1000, scoped, tag = 'output window, operand 0, single buffered']
    %7 = vsyncpa [#allocation3], 0
    %8 = vsyncpa [#allocation4], 0
    // Predicated region
    $region2: #{tpu_custom_call.1} parent=1 // pred_check
      _
    $region3: #{tpu_custom_call.1} parent=1 // pred_check_branch
      %10 = sbr.rel (0) target = $region5
    $region4: #{tpu_custom_call.1} parent=1 // pred_region
      _
    $region5: #{tpu_custom_call.1} parent=1 // pred_fallthru
      _
    // Predicated region
    $region6: #{tpu_custom_call.1} parent=1 // pred_check
      _
    $region7: #{tpu_custom_call.1} parent=1 // pred_check_branch
      %12 = sbr.rel (0) target = $region9
    $region8: #{tpu_custom_call.1} parent=1 // pred_region
      %14 = vsyncadd [#allocation3], 0
      %s15 = sshll.u32 %s1, 4
      %s16 = int_to_ptr.hbm [resolvable:$true] %s15
      %s17 = sshll.u32 [#allocation2], 4
      %s18 = int_to_ptr.vmem [resolvable:$true] %s17
      %23 = dma.hbm_to_vmem [thread:$0]  %s16, 4608, %s18, [#allocation3], 128, 128, 8
    $region9: #{tpu_custom_call.1} parent=1 // pred_fallthru
      _
    // Predicated region
    $region10: #{tpu_custom_call.1} parent=1 // pred_check
      _
    $region11: #{tpu_custom_call.1} parent=1 // pred_check_branch
      %25 = sbr.rel (0) target = $region13
    $region12: #{tpu_custom_call.1} parent=1 // pred_region
      %27 = dma.done [#allocation3], 4608
    $region13: #{tpu_custom_call.1} parent=1 // pred_fallthru
      _
    %v28 = vld [vmem:[%s0] sm:$0xff]
    %v29 = vld [vmem:[#allocation2] sm:$0xff]
    %v30 = vld [vmem:[#allocation2 + $0x8] sm:$0x1]
    %32 = vset.pattern.permute.xlu0 0
    %33 = vperm.xlu0 %32, %v28
    %v34 = vpop.permute.xlu0 %33
    %v36 = vperm.slane %v29, 0
    %v37 = vmul.f32 %v34, %v36
    %v38 = vperm.slane %v30, 0
    %v39 = vadd.f32 %v38, %v37
    %40 = vset.pattern.permute.xlu0 1
    %41 = vperm.xlu0 %40, %v28
    %v42 = vpop.permute.xlu0 %41
    %v44 = vperm.slane %v29, 1
    %v45 = vmul.f32 %v42, %v44
    %v46 = vadd.f32 %v39, %v45
    %47 = vset.pattern.permute.xlu0 2
    %48 = vperm.xlu0 %47, %v28
    %v49 = vpop.permute.xlu0 %48
    %v51 = vperm.slane %v29, 2
    %v52 = vmul.f32 %v49, %v51
    %v53 = vadd.f32 %v46, %v52
    %54 = vset.pattern.permute.xlu0 3
    %55 = vperm.xlu0 %54, %v28
    %v56 = vpop.permute.xlu0 %55
    %v58 = vperm.slane %v29, 3
    %v59 = vmul.f32 %v56, %v58
    %v60 = vadd.f32 %v53, %v59
    %v61 = vtanh.pop %v60
    %v62 = vld [vmem:[#allocation2 + $0x10] sm:$0xff]
    %v63 = vld [vmem:[#allocation2 + $0x18] sm:$0xff]
    %v64 = vld [vmem:[#allocation2 + $0x20] sm:$0xff]
    %v65 = vld [vmem:[#allocation2 + $0x28] sm:$0xff]
    %v66 = vld [vmem:[#allocation2 + $0x30] sm:$0xff]
    %v67 = vld [vmem:[#allocation2 + $0x38] sm:$0xff]
    %v68 = vld [vmem:[#allocation2 + $0x40] sm:$0xff]
    %v69 = vld [vmem:[#allocation2 + $0x48] sm:$0xff]
    %v70 = vld [vmem:[#allocation2 + $0x50] sm:$0xff]
    %v71 = vld [vmem:[#allocation2 + $0x58] sm:$0xff]
    %v72 = vld [vmem:[#allocation2 + $0x60] sm:$0xff]
    %v73 = vld [vmem:[#allocation2 + $0x68] sm:$0xff]
    %v74 = vld [vmem:[#allocation2 + $0x70] sm:$0xff]
    %v75 = vld [vmem:[#allocation2 + $0x78] sm:$0xff]
    %v76 = vld [vmem:[#allocation2 + $0x80] sm:$0xff]
    %v77 = vld [vmem:[#allocation2 + $0x88] sm:$0xff]
    %v78 = vld [vmem:[#allocation2 + $0x90] sm:$0x1]
    %v79 = vperm.slane %v78, 0
    %80 = vmatpush.msra.mxu0 %v77
    %81 = vmatpush.msra.mxu0 %v76
    %82 = vmatpush.msra.mxu0 %v75
    %83 = vmatpush.msra.mxu0 %v74
    %84 = vmatpush.msra.mxu0 %v73
    %85 = vmatpush.msra.mxu0 %v72
    %86 = vmatpush.msra.mxu0 %v71
    %87 = vmatpush.msra.mxu0 %v70
    %88 = vmatpush.msra.mxu0 %v69
    %89 = vmatpush.msra.mxu0 %v68
    %90 = vmatpush.msra.mxu0 %v67
    %91 = vmatpush.msra.mxu0 %v66
    %92 = vmatpush.msra.mxu0 %v65
    %93 = vmatpush.msra.mxu0 %v64
    %94 = vmatpush.msra.mxu0 %v63
    %95 = vmatpush.msra.mxu0 %v62
    %96 = vmatmul.f32.gmra.mxu0 %v61
    %v97 = vpop.f32.mrf.mxu0
    %v98 = vadd.f32 %v79, %v97
    %99 = vdwg.mxu0
    %v100 = vtanh.pop %v98
    %v101 = vld [vmem:[#allocation2 + $0x98] sm:$0xff]
    %v102 = vld [vmem:[#allocation2 + $0xa0] sm:$0xff]
    %v103 = vld [vmem:[#allocation2 + $0xa8] sm:$0xff]
    %v104 = vld [vmem:[#allocation2 + $0xb0] sm:$0xff]
    %v105 = vld [vmem:[#allocation2 + $0xb8] sm:$0xff]
    %v106 = vld [vmem:[#allocation2 + $0xc0] sm:$0xff]
    %v107 = vld [vmem:[#allocation2 + $0xc8] sm:$0xff]
    %v108 = vld [vmem:[#allocation2 + $0xd0] sm:$0xff]
    %v109 = vld [vmem:[#allocation2 + $0xd8] sm:$0xff]
    %v110 = vld [vmem:[#allocation2 + $0xe0] sm:$0xff]
    %v111 = vld [vmem:[#allocation2 + $0xe8] sm:$0xff]
    %v112 = vld [vmem:[#allocation2 + $0xf0] sm:$0xff]
    %v113 = vld [vmem:[#allocation2 + $0xf8] sm:$0xff]
    %v114 = vld [vmem:[#allocation2 + $0x100] sm:$0xff]
    %v115 = vld [vmem:[#allocation2 + $0x108] sm:$0xff]
    %v116 = vld [vmem:[#allocation2 + $0x110] sm:$0xff]
    %v117 = vld [vmem:[#allocation2 + $0x118] sm:$0x1]
    %v118 = vperm.slane %v117, 0
    %119 = vmatpush.msra.mxu0 %v116
    %120 = vmatpush.msra.mxu0 %v115
    %121 = vmatpush.msra.mxu0 %v114
    %122 = vmatpush.msra.mxu0 %v113
    %123 = vmatpush.msra.mxu0 %v112
    %124 = vmatpush.msra.mxu0 %v111
    %125 = vmatpush.msra.mxu0 %v110
    %126 = vmatpush.msra.mxu0 %v109
    %127 = vmatpush.msra.mxu0 %v108
    %128 = vmatpush.msra.mxu0 %v107
    %129 = vmatpush.msra.mxu0 %v106
    %130 = vmatpush.msra.mxu0 %v105
    %131 = vmatpush.msra.mxu0 %v104
    %132 = vmatpush.msra.mxu0 %v103
    %133 = vmatpush.msra.mxu0 %v102
    %134 = vmatpush.msra.mxu0 %v101
    %135 = vmatmul.f32.gmra.mxu0 %v100
    %v136 = vpop.f32.mrf.mxu0
    %v137 = vadd.f32 %v118, %v136
    %138 = vdwg.mxu0
    %139 = vst [vmem:[#allocation5] sm:$0xff] %v137
    // Predicated region
    $region14: #{tpu_custom_call.1} parent=1 // pred_check
      _
    $region15: #{tpu_custom_call.1} parent=1 // pred_check_branch
      %141 = sbr.rel (0) target = $region17
    $region16: #{tpu_custom_call.1} parent=1 // pred_region
      %143 = vsyncadd [#allocation4], 0
      %s145 = sshll.u32 [#allocation5], 4
      %s146 = int_to_ptr.vmem [resolvable:$true] %s145
      %s147 = sshll.u32 %s2, 4
      %s148 = int_to_ptr.hbm [resolvable:$true] %s147
      %150 = dma.vmem_to_hbm [thread:$0]  %s146, 128, %s148, [#allocation4]
    $region17: #{tpu_custom_call.1} parent=1 // pred_fallthru
      _
    // Predicated region
    $region18: #{tpu_custom_call.1} parent=1 // pred_check
      _
    $region19: #{tpu_custom_call.1} parent=1 // pred_check_branch
      %152 = sbr.rel (0) target = $region21
    $region20: #{tpu_custom_call.1} parent=1 // pred_region
      %154 = dma.done [#allocation4], 128
    $region21: #{tpu_custom_call.1} parent=1 // pred_fallthru
      _
    %155 = vsyncpa [#allocation3], 1
    %156 = vsyncpa [#allocation4], 1

</llo_original>
